<compile_context>
chip_gen: v7x
topology: tpu7x:2x2x1
jax: 0.10.0
libtpu: 0.0.40
codegen_flags: <defaults>
</compile_context>

<pallas_src>
import functools

import jax
import jax.numpy as jnp
import numpy as np
from jax.experimental import pallas as pl
from jax.experimental.pallas import tpu as pltpu


# ---------------------------------------------------------------------------
# Kernel
# ---------------------------------------------------------------------------
def critic_kernel(n_heads, fc1_dims, state_ref, action_ref,
                  w1s_ref, w1a_ref, b1_ref, w23_ref, b23_ref, q_ref):
    # fc1 with the concat fused: x @ w1 == state @ w1[:Ds] + action @ w1[Ds:]
    # (weights of all heads are column-concatenated, so one MXU pass serves every head)
    s16 = state_ref[...].astype(jnp.bfloat16)
    a16 = action_ref[...].astype(jnp.bfloat16)
    h1 = (jnp.dot(s16, w1s_ref[...], preferred_element_type=jnp.float32)
          + jnp.dot(a16, w1a_ref[...], preferred_element_type=jnp.float32)
          + b1_ref[...])
    h1 = jnp.maximum(h1, 0.0)                                  # [tb, H*256] f32

    # fc2 + q1 folded into one linear head per critic (valid: q1 consumes the PRE-ReLU
    # fc2 output).  N=1 per head, so use the VPU + a lane reduction instead of the MXU.
    for h in range(n_heads):                                   # static unroll, H <= 2
        lo = h * fc1_dims
        seg = h1[:, lo:lo + fc1_dims]                          # lane-aligned static slice
        q_h = (jnp.sum(seg * w23_ref[:, lo:lo + fc1_dims], axis=-1, keepdims=True)
               + b23_ref[:, h:h + 1])
        q_ref[:, h:h + 1] = q_h                                # [tb, 1] column store


# ---------------------------------------------------------------------------
# Parameter preparation (run once per weight update, NOT per forward call)
# ---------------------------------------------------------------------------
def _dot_hi(a, b):
    return jnp.dot(a, b, precision=jax.lax.Precision.HIGHEST)


def prepare_kernel_params(param_sets, state_dim):
    """Fold fc2 into the q1 head, split fc1's weight for the fused concat, cast to bf16.

    param_sets: sequence of per-critic (w1, b1, w2, b2, w3, b3) tuples
                (length 1 for a single CriticNetwork, length 2 for fused TD3 twin critics).
    """
    w1s_c, w1a_c, b1_c, w23_c, b23_c = [], [], [], [], []
    for (w1, b1, w2, b2, w3, b3) in param_sets:
        w1s_c.append(w1[:state_dim])                  # [Ds, 256]
        w1a_c.append(w1[state_dim:])                  # [Da, 256]
        b1_c.append(b1)                               # [1, 256]
        w23_c.append(_dot_hi(w2, w3).T)               # [1, 256]  folded fc2@q1
        b23_c.append(_dot_hi(b2, w3) + b3)            # [1, 1]
    w1s = jnp.concatenate(w1s_c, axis=1).astype(jnp.bfloat16)   # [Ds, H*256] bf16
    w1a = jnp.concatenate(w1a_c, axis=1).astype(jnp.bfloat16)   # [Da, H*256] bf16
    b1 = jnp.concatenate(b1_c, axis=1).astype(jnp.float32)      # [1, H*256]  f32
    w23 = jnp.concatenate(w23_c, axis=1).astype(jnp.float32)    # [1, H*256]  f32
    b23 = jnp.concatenate(b23_c, axis=1).astype(jnp.float32)    # [1, H]      f32
    return w1s, w1a, b1, w23, b23


# ---------------------------------------------------------------------------
# Batch-tile selection
# ---------------------------------------------------------------------------
_MAX_TILE_B = 1024      # ~4-5 MiB padded VMEM per tile -> fits every chip's default budget
_SINGLE_TILE_B = 512    # below this, use one full-array block (B need not be 8-aligned)


def _round_up(x, m):
    return ((x + m - 1) // m) * m


def _pick_tile_b(batch, tile_b):
    if tile_b is not None:
        return tile_b
    if batch <= _SINGLE_TILE_B:
        return batch                                   # single full-array block
    # >= 2 balanced tiles so the "parallel" batch axis can use both v7x TensorCores;
    # the extra grid step (~0.35 us) is negligible on 1-TC v5e/v6e at this size.
    return min(_MAX_TILE_B, _round_up(-(-batch // 2), 8))


# ---------------------------------------------------------------------------
# Forward wrapper
# ---------------------------------------------------------------------------
@functools.partial(jax.jit, static_argnames=("tile_b",))
def critic_forward(state, action, kparams, *, tile_b=None):
    """state: [B, prod(input_dims)] (or [B, *input_dims]), action: [B, n_actions]
    -> q: [B, n_heads]  (n_heads=1 for the plain CriticNetwork, 2 for fused twin critics)."""
    w1s, w1a, b1, w23, b23 = kparams
    if state.ndim > 2:
        state = state.reshape(state.shape[0], -1)
    # Accept f32 or bf16 inputs as-is (bf16 halves per-row input HBM traffic when the
    # producer already stores bf16); never add a wrapper-side cast round trip.
    if state.dtype not in (jnp.float32, jnp.bfloat16):
        state = state.astype(jnp.float32)
    if action.dtype not in (jnp.float32, jnp.bfloat16):
        action = action.astype(jnp.float32)

    B, ds = state.shape
    da = action.shape[1]
    n_heads = b23.shape[1]
    fc1_dims = w1s.shape[1] // n_heads

    tb = _pick_tile_b(B, tile_b)
    grid = (pl.cdiv(B, tb),)      # edge block (if any) is padded; rows are independent

    resident = lambda i: (0, 0)   # weights DMA'd once, VMEM-resident across batch tiles
    kernel = functools.partial(critic_kernel, n_heads, fc1_dims)

    return pl.pallas_call(
        kernel,
        out_shape=jax.ShapeDtypeStruct((B, n_heads), jnp.float32),
        grid_spec=pltpu.PrefetchScalarGridSpec(
            num_scalar_prefetch=0,
            grid=grid,
            in_specs=[
                pl.BlockSpec((tb, ds), lambda i: (i, 0)),    # state tile
                pl.BlockSpec((tb, da), lambda i: (i, 0)),    # action tile
                pl.BlockSpec(w1s.shape, resident),
                pl.BlockSpec(w1a.shape, resident),
                pl.BlockSpec(b1.shape, resident),
                pl.BlockSpec(w23.shape, resident),
                pl.BlockSpec(b23.shape, resident),
            ],
            out_specs=pl.BlockSpec((tb, n_heads), lambda i: (i, 0)),
        ),
        compiler_params=pltpu.CompilerParams(
            dimension_semantics=("parallel",),       # shard batch tiles across v7x's 2 TCs
            vmem_limit_bytes=32 * 1024 * 1024,       # headroom for caller-chosen larger tile_b
        ),
    )(state, action, w1s, w1a, b1, w23, b23)


# ---------------------------------------------------------------------------
# Init + plain-JAX reference
# ---------------------------------------------------------------------------
def init_params(key, fc1_in, fc1_dims=256, fc2_dims=128):
    """PyTorch-Linear-style init U(-1/sqrt(fan_in), 1/sqrt(fan_in)).
    Weights stored as [in, out] (transposed vs. torch), biases as [1, out], all f32."""
    ks = jax.random.split(key, 6)

    def lin(kw, kb, fan_in, fan_out):
        bound = 1.0 / np.sqrt(fan_in)
        w = jax.random.uniform(kw, (fan_in, fan_out), jnp.float32, -bound, bound)
        b = jax.random.uniform(kb, (1, fan_out), jnp.float32, -bound, bound)
        return w, b

    w1, b1 = lin(ks[0], ks[1], fc1_in, fc1_dims)
    w2, b2 = lin(ks[2], ks[3], fc1_dims, fc2_dims)
    w3, b3 = lin(ks[4], ks[5], fc2_dims, 1)
    return (w1, b1, w2, b2, w3, b3)


def critic_reference(state, action, params, *, match_kernel_dtypes=False):
    """Plain-JAX reference mirroring the PyTorch forward (unfolded, un-split)."""
    w1, b1, w2, b2, w3, b3 = params
    x = jnp.concatenate([state.reshape(state.shape[0], -1), action], axis=1).astype(jnp.float32)
    if match_kernel_dtypes:  # mimic the kernel's bf16 fc1 inputs for a tight comparison
        x = x.astype(jnp.bfloat16).astype(jnp.float32)
        w1 = w1.astype(jnp.bfloat16).astype(jnp.float32)
    h1 = jnp.maximum(_dot_hi(x, w1) + b1, 0.0)
    h2 = _dot_hi(h1, w2) + b2          # relu(h2) is computed by the module but unused for q1
    return _dot_hi(h2, w3) + b3


# ---------------------------------------------------------------------------
# Demo / self-check
# ---------------------------------------------------------------------------
if __name__ == "__main__":
    batch = 2
    input_dims = (30,)
    n_actions = 2
    state_dim = int(np.prod(input_dims))
    fc1_in = state_dim + n_actions  # 32

    key = jax.random.PRNGKey(0)
    k_s, k_a, k_p1, k_p2, k_s2, k_a2 = jax.random.split(key, 6)

    state = jax.random.normal(k_s, (batch,) + input_dims, jnp.float32)
    action = jax.random.normal(k_a, (batch, n_actions), jnp.float32)

    params = init_params(k_p1, fc1_in)                        # torch-style f32 params
    kparams = prepare_kernel_params([params], state_dim)      # fold/split/cast ONCE

    # --- small-batch forward (shapes the module implies) -------------------
    q = jax.block_until_ready(critic_forward(state, action, kparams))
    assert q.shape == (batch, 1), q.shape

    q_ref_match = critic_reference(state, action, params, match_kernel_dtypes=True)
    np.testing.assert_allclose(np.asarray(q), np.asarray(q_ref_match), rtol=1e-4, atol=1e-4)
    q_ref_f32 = critic_reference(state, action, params)
    np.testing.assert_allclose(np.asarray(q), np.asarray(q_ref_f32), rtol=3e-2, atol=3e-2)

    # --- training-scale batch: exercises the 2-tile "parallel" grid + resident weights --
    big_b = 2048
    state_b = jax.random.normal(k_s2, (big_b,) + input_dims, jnp.float32)
    action_b = jax.random.normal(k_a2, (big_b, n_actions), jnp.float32)
    q_b = jax.block_until_ready(critic_forward(state_b, action_b, kparams))
    q_b_ref = critic_reference(state_b, action_b, params, match_kernel_dtypes=True)
    np.testing.assert_allclose(np.asarray(q_b), np.asarray(q_b_ref), rtol=1e-4, atol=1e-4)

    # --- fused TD3 twin-critic call: both critics in one kernel, [B, 2] output ----------
    params_q2 = init_params(k_p2, fc1_in)
    kparams_twin = prepare_kernel_params([params, params_q2], state_dim)
    q_twin = jax.block_until_ready(critic_forward(state_b, action_b, kparams_twin))
    assert q_twin.shape == (big_b, 2), q_twin.shape
    ref_c1 = critic_reference(state_b, action_b, params, match_kernel_dtypes=True)
    ref_c2 = critic_reference(state_b, action_b, params_q2, match_kernel_dtypes=True)
    np.testing.assert_allclose(np.asarray(q_twin[:, 0:1]), np.asarray(ref_c1), rtol=1e-4, atol=1e-4)
    np.testing.assert_allclose(np.asarray(q_twin[:, 1:2]), np.asarray(ref_c2), rtol=1e-4, atol=1e-4)

    print("KERNEL_OK")
</pallas_src>

<mosaic_0001>
module attributes {stable_mosaic.version = 11 : i64} {
  func.func @critic_kernel(%arg0: i32, %arg1: memref<2x30xf32, #tpu.memory_space<vmem>>, %arg2: memref<2x2xf32, #tpu.memory_space<vmem>>, %arg3: memref<30x256xbf16, #tpu.memory_space<vmem>>, %arg4: memref<2x256xbf16, #tpu.memory_space<vmem>>, %arg5: memref<1x256xf32, #tpu.memory_space<vmem>>, %arg6: memref<1x256xf32, #tpu.memory_space<vmem>>, %arg7: memref<1x1xf32, #tpu.memory_space<vmem>>, %arg8: memref<2x1xf32, #tpu.memory_space<vmem>>) attributes {dimension_semantics = [#tpu.dimension_semantics<parallel>], iteration_bounds = array<i64: 1>, scalar_prefetch = 0 : i64, scratch_operands = 0 : i64, tpu.core_type = #tpu.core_type<tc>, window_params = [{transform_indices = @transform_0, window_bounds = array<i64: 2, 30>}, {transform_indices = @transform_1, window_bounds = array<i64: 2, 2>}, {pipeline_mode = #tpu.pipeline_mode<synchronous>, transform_indices = @transform_2, window_bounds = array<i64: 30, 256>}, {pipeline_mode = #tpu.pipeline_mode<synchronous>, transform_indices = @transform_3, window_bounds = array<i64: 2, 256>}, {pipeline_mode = #tpu.pipeline_mode<synchronous>, transform_indices = @transform_4, window_bounds = array<i64: 1, 256>}, {pipeline_mode = #tpu.pipeline_mode<synchronous>, transform_indices = @transform_5, window_bounds = array<i64: 1, 256>}, {pipeline_mode = #tpu.pipeline_mode<synchronous>, transform_indices = @transform_6, window_bounds = array<i64: 1, 1>}, {transform_indices = @transform_7, window_bounds = array<i64: 2, 1>}]} {
    %c0 = arith.constant 0 : index
    %c0_0 = arith.constant 0 : index
    %0 = vector.load %arg1[%c0, %c0_0] : memref<2x30xf32, #tpu.memory_space<vmem>>, vector<2x30xf32>
    %1 = arith.truncf %0 : vector<2x30xf32> to vector<2x30xbf16>
    %c0_1 = arith.constant 0 : index
    %c0_2 = arith.constant 0 : index
    %2 = vector.load %arg2[%c0_1, %c0_2] : memref<2x2xf32, #tpu.memory_space<vmem>>, vector<2x2xf32>
    %3 = arith.truncf %2 : vector<2x2xf32> to vector<2x2xbf16>
    %c0_3 = arith.constant 0 : index
    %c0_4 = arith.constant 0 : index
    %4 = vector.load %arg3[%c0_3, %c0_4] : memref<30x256xbf16, #tpu.memory_space<vmem>>, vector<30x256xbf16>
    %cst = arith.constant dense<0.000000e+00> : vector<2x256xf32>
    %5 = tpu.matmul %1, %4, %cst {dimension_numbers = #tpu.dot_dimension_numbers<[1], [0], [0], [1], [0, 0, 1, 1], [], []>} : vector<2x30xbf16>, vector<30x256xbf16>, vector<2x256xf32> -> vector<2x256xf32>
    %c0_5 = arith.constant 0 : index
    %c0_6 = arith.constant 0 : index
    %6 = vector.load %arg4[%c0_5, %c0_6] : memref<2x256xbf16, #tpu.memory_space<vmem>>, vector<2x256xbf16>
    %cst_7 = arith.constant dense<0.000000e+00> : vector<2x256xf32>
    %7 = tpu.matmul %3, %6, %cst_7 {dimension_numbers = #tpu.dot_dimension_numbers<[1], [0], [0], [1], [0, 0, 1, 1], [], []>} : vector<2x2xbf16>, vector<2x256xbf16>, vector<2x256xf32> -> vector<2x256xf32>
    %8 = arith.addf %5, %7 : vector<2x256xf32>
    %c0_8 = arith.constant 0 : index
    %c0_9 = arith.constant 0 : index
    %9 = vector.load %arg5[%c0_8, %c0_9] : memref<1x256xf32, #tpu.memory_space<vmem>>, vector<1x256xf32>
    %10 = vector.broadcast %9 : vector<1x256xf32> to vector<2x256xf32>
    %11 = arith.addf %8, %10 : vector<2x256xf32>
    %cst_10 = arith.constant 0.000000e+00 : f32
    %12 = vector.broadcast %cst_10 : f32 to vector<2x256xf32>
    %13 = arith.maximumf %11, %12 : vector<2x256xf32>
    %c0_11 = arith.constant 0 : index
    %c0_12 = arith.constant 0 : index
    %14 = vector.load %arg6[%c0_11, %c0_12] : memref<1x256xf32, #tpu.memory_space<vmem>>, vector<1x256xf32>
    %15 = vector.broadcast %14 : vector<1x256xf32> to vector<2x256xf32>
    %16 = arith.mulf %13, %15 : vector<2x256xf32>
    %cst_13 = arith.constant dense<0.000000e+00> : vector<2xf32>
    %17 = vector.multi_reduction <add>, %16, %cst_13 [1] : vector<2x256xf32> to vector<2xf32>
    %18 = vector.shape_cast %17 : vector<2xf32> to vector<2x1xf32>
    %c0_14 = arith.constant 0 : index
    %c0_15 = arith.constant 0 : index
    %19 = vector.load %arg7[%c0_14, %c0_15] : memref<1x1xf32, #tpu.memory_space<vmem>>, vector<1x1xf32>
    %20 = vector.broadcast %19 : vector<1x1xf32> to vector<2x1xf32>
    %21 = arith.addf %18, %20 : vector<2x1xf32>
    %c0_16 = arith.constant 0 : index
    %c0_17 = arith.constant 0 : index
    %22 = vector.load %arg8[%c0_16, %c0_17] : memref<2x1xf32, #tpu.memory_space<vmem>>, vector<2x1xf32>
    tpu.vector_store %arg8[%c0_16, %c0_17], %21 {strides = array<i32>} : memref<2x1xf32, #tpu.memory_space<vmem>>, vector<2x1xf32>,
    return
  }
  func.func @transform_0(%arg0: i32) -> (i32, i32) {
    %c0_i32 = arith.constant 0 : i32
    %c0_i32_0 = arith.constant 0 : i32
    return %arg0, %c0_i32 : i32, i32
  }
  func.func @transform_1(%arg0: i32) -> (i32, i32) {
    %c0_i32 = arith.constant 0 : i32
    %c0_i32_0 = arith.constant 0 : i32
    return %arg0, %c0_i32 : i32, i32
  }
  func.func @transform_2(%arg0: i32) -> (i32, i32) {
    %c0_i32 = arith.constant 0 : i32
    %c0_i32_0 = arith.constant 0 : i32
    %c0_i32_1 = arith.constant 0 : i32
    return %c0_i32, %c0_i32_0 : i32, i32
  }
  func.func @transform_3(%arg0: i32) -> (i32, i32) {
    %c0_i32 = arith.constant 0 : i32
    %c0_i32_0 = arith.constant 0 : i32
    %c0_i32_1 = arith.constant 0 : i32
    return %c0_i32, %c0_i32_0 : i32, i32
  }
  func.func @transform_4(%arg0: i32) -> (i32, i32) {
    %c0_i32 = arith.constant 0 : i32
    %c0_i32_0 = arith.constant 0 : i32
    %c0_i32_1 = arith.constant 0 : i32
    return %c0_i32, %c0_i32_0 : i32, i32
  }
  func.func @transform_5(%arg0: i32) -> (i32, i32) {
    %c0_i32 = arith.constant 0 : i32
    %c0_i32_0 = arith.constant 0 : i32
    %c0_i32_1 = arith.constant 0 : i32
    return %c0_i32, %c0_i32_0 : i32, i32
  }
  func.func @transform_6(%arg0: i32) -> (i32, i32) {
    %c0_i32 = arith.constant 0 : i32
    %c0_i32_0 = arith.constant 0 : i32
    %c0_i32_1 = arith.constant 0 : i32
    return %c0_i32, %c0_i32_0 : i32, i32
  }
  func.func @transform_7(%arg0: i32) -> (i32, i32) {
    %c0_i32 = arith.constant 0 : i32
    %c0_i32_0 = arith.constant 0 : i32
    return %arg0, %c0_i32 : i32, i32
  }
}

</mosaic_0001>

<llo_original>
// kernel: critic_forward.1
$region0: #{critic_forward.1}
  #allocation0 [shape = 'u32[]', space=smem, size = 0x4, offset = 0x4, fixed_abs, tag = 'smem constant byte address 0x4 - core index']
  #allocation1 [shape = 'u32[144,128]{1,0:T(1,128)}', space=vmem, size = 0x12000, scoped, tag = 'internal scratch']
  #allocation2 [shape = 'f32[1,1]{1,0:T(1,128)S(1)}', space=vmem, size = 0x200, scoped, tag = 'scoped memory for critic_forward.1']
  %s0 = inlined_call_operand.vmem [shape: f32[2,30], index: 0, kind: input, shape index: {}]
  %s1 = inlined_call_operand.vmem [shape: f32[2,2], index: 1, kind: input, shape index: {}]
  %s2 = inlined_call_operand.hbm [shape: bf16[30,256], index: 2, kind: input, shape index: {}]
  %s3 = inlined_call_operand.vmem [shape: bf16[2,256], index: 3, kind: input, shape index: {}]
  %s4 = inlined_call_operand.vmem [shape: f32[1,256], index: 4, kind: input, shape index: {}]
  %s5 = inlined_call_operand.vmem [shape: f32[1,256], index: 5, kind: input, shape index: {}]
  %s6 = inlined_call_operand.<no memory space> [shape: f32[1,1], index: 6, kind: input, shape index: {}]
  %s7 = inlined_call_operand.vmem [shape: f32[2,1], index: 7, kind: output, shape index: {}]
  %s8 = sld [smem:[#allocation0]]
  $region42: #{critic_forward.1} parent=0
    _
  %s10 = ssub.s32 1, %s8
  %s11 = scalar_select 0, %s10, %s8
  %v12 = vstv %s6
  %13 = vst [vmem:[#allocation2] sm:$0x1] %v12
  $region1: #{critic_forward.1} parent=0
    #allocation3 [shape = 'u8[16384]{0}', space=vmem, size = 0x4000, scoped, tag = 'input window, operand 2, single buffered']
    #allocation4 [shape = 's32[1]{0}', space=sflag, size = 0x4, scoped, tag = 'scoped memory for critic_forward.1']
    %14 = vsyncpa [#allocation4], 0
    // Predicated region
    $region2: #{critic_forward.1} parent=1 // pred_check
      _
    $region3: #{critic_forward.1} parent=1 // pred_check_branch
      %16 = sbr.rel (0) target = $region5
    $region4: #{critic_forward.1} parent=1 // pred_region
      _
    $region5: #{critic_forward.1} parent=1 // pred_fallthru
      _
    // Predicated region
    $region6: #{critic_forward.1} parent=1 // pred_check
      _
    $region7: #{critic_forward.1} parent=1 // pred_check_branch
      %18 = sbr.rel (0) target = $region9
    $region8: #{critic_forward.1} parent=1 // pred_region
      _
    $region9: #{critic_forward.1} parent=1 // pred_fallthru
      _
    // Predicated region
    $region10: #{critic_forward.1} parent=1 // pred_check
      _
    $region11: #{critic_forward.1} parent=1 // pred_check_branch
      %20 = sbr.rel (0) target = $region13
    $region12: #{critic_forward.1} parent=1 // pred_region
      %s22 = ssub.s32 512, 512
      %23 = vsyncadd [#allocation4], %s22
      %s24 = sshll.u32 [#allocation3], 4
      %s25 = int_to_ptr.vmem [resolvable:$true] %s24
      %30 = dma.hbm_to_vmem [thread:$0]  %s2, 512, %s25, [#allocation4], 128, 128, 8
    $region13: #{critic_forward.1} parent=1 // pred_fallthru
      _
    // Predicated region
    $region14: #{critic_forward.1} parent=1 // pred_check
      _
    $region15: #{critic_forward.1} parent=1 // pred_check_branch
      %32 = sbr.rel (0) target = $region17
    $region16: #{critic_forward.1} parent=1 // pred_region
      _
    $region17: #{critic_forward.1} parent=1 // pred_fallthru
      _
    // Predicated region
    $region18: #{critic_forward.1} parent=1 // pred_check
      _
    $region19: #{critic_forward.1} parent=1 // pred_check_branch
      %34 = sbr.rel (0) target = $region21
    $region20: #{critic_forward.1} parent=1 // pred_region
      _
    $region21: #{critic_forward.1} parent=1 // pred_fallthru
      _
    // Predicated region
    $region22: #{critic_forward.1} parent=1 // pred_check
      _
    $region23: #{critic_forward.1} parent=1 // pred_check_branch
      %36 = sbr.rel (0) target = $region25
    $region24: #{critic_forward.1} parent=1 // pred_region
      _
    $region25: #{critic_forward.1} parent=1 // pred_fallthru
      _
    // Predicated region
    $region26: #{critic_forward.1} parent=1 // pred_check
      _
    $region27: #{critic_forward.1} parent=1 // pred_check_branch
      %38 = sbr.rel (0) target = $region29
    $region28: #{critic_forward.1} parent=1 // pred_region
      _
    $region29: #{critic_forward.1} parent=1 // pred_fallthru
      _
    // Predicated region
    $region30: #{critic_forward.1} parent=1 // pred_check
      _
    $region31: #{critic_forward.1} parent=1 // pred_check_branch
      %40 = sbr.rel (0) target = $region33
    $region32: #{critic_forward.1} parent=1 // pred_region
      %41 = dma.done [#allocation4], 512
    $region33: #{critic_forward.1} parent=1 // pred_fallthru
      _
    %v43 = vld [vmem:[%s0] sm:$0x3]
    %v44 = vpack.c.bf16 %v43, %v43
    %v45 = vld [vmem:[%s1] sm:$0x3]
    %v46 = vpack.c.bf16 %v45, %v45
    %v47 = vld [vmem:[#allocation3] sm:$0xff]
    %v48 = vld [vmem:[#allocation3 + $0x8] sm:$0xff]
    %v49 = vld [vmem:[#allocation3 + $0x10] sm:$0xff]
    %v50 = vld [vmem:[#allocation3 + $0x18] sm:$0x77]
    %v51 = vld [vmem:[%s3] sm:$0x3]
    %v54 = vunpack.c.l.s4 1966171168
    %v55 = vunpack.c.0.s8 %v54
    %v56 = vlaneseq
    %v57 = vshrl.u32 %v56, 7
    %v58 = vsub.s32 %v55, %v57
    %v59 = vrot.slane %v51, %v58
    %v60 = vcombine.high %v59, %v59
    %v62 = vunpack.c.l.s4 1966171168
    %v63 = vunpack.c.0.s8 %v62
    %v64 = vlaneseq
    %v65 = vshrl.u32 %v64, 7
    %v66 = vsub.s32 %v63, %v65
    %v67 = vrot.slane %v59, %v66
    %v69 = vunpack.c.l.s4 1966171168
    %v70 = vunpack.c.0.s8 %v69
    %v71 = vlaneseq
    %v72 = vshrl.u32 %v71, 7
    %v73 = vsub.s32 %v70, %v72
    %v74 = vrot.slane %v60, %v73
    %vm75 = vcmask 15360
    %v77 = vsel %vm75, %v46, 0
    %vm79 = vcmask 1040384
    %v81 = vsel %vm79, %v67, 0
    %v84 = vsel %vm79, %v74, 0
    %86 = vmatprep.subr.bf16.mxu0 %v84
    %87 = vmatpush1.bf16.msra.mxu0 %v81
    %88 = vmatprep.subr.bf16.mxu0 0
    %89 = vmatpush1.bf16.msra.mxu0 0
    %90 = vmatprep.subr.bf16.mxu0 0
    %91 = vmatpush1.bf16.msra.mxu0 0
    %92 = vmatprep.subr.bf16.mxu0 0
    %93 = vmatpush1.bf16.msra.mxu0 0
    %94 = vmatprep.subr.bf16.mxu0 0
    %95 = vmatpush1.bf16.msra.mxu0 0
    %96 = vmatprep.subr.bf16.mxu0 0
    %97 = vmatpush1.bf16.msra.mxu0 0
    %98 = vmatprep.subr.bf16.mxu0 0
    %99 = vmatpush1.bf16.msra.mxu0 0
    %100 = vmatprep.subr.bf16.mxu0 0
    %101 = vmatpush1.bf16.msra.mxu0 0
    %102 = vmatprep.subr.bf16.mxu0 0
    %103 = vmatpush1.bf16.msra.mxu0 0
    %104 = vmatprep.subr.bf16.mxu0 0
    %105 = vmatpush1.bf16.msra.mxu0 0
    %106 = vmatprep.subr.bf16.mxu0 0
    %107 = vmatpush1.bf16.msra.mxu0 0
    %108 = vmatprep.subr.bf16.mxu0 0
    %109 = vmatpush1.bf16.msra.mxu0 0
    %110 = vmatprep.subr.bf16.mxu0 0
    %111 = vmatpush1.bf16.msra.mxu0 0
    %112 = vmatprep.subr.bf16.mxu0 0
    %113 = vmatpush1.bf16.msra.mxu0 0
    %114 = vmatprep.subr.bf16.mxu0 0
    %115 = vmatpush1.bf16.msra.mxu0 0
    %116 = vmatprep.subr.bf16.mxu0 0
    %117 = vmatpush1.bf16.msra.mxu0 0
    %118 = vmatprep.mubr.bf16.mxu0 0
    %119 = vmatmul.mubr.bf16.gmra.mrb[0].mxu0 %v77
    %v120 = vpop.f32.mrb[0].mxu0
    %v121 = vadd.f32 0.0, %v120
    %v122 = vpop.f32.mrb[0].mxu0
    %v123 = vadd.f32 0.0, %v122
    %v124 = vpop.f32.mrb[0].mxu0
    %v125 = vpop.f32.mrb[0].mxu0
    %126 = vdwg.mxu0
    %v131 = vunpack.c.l.b16 %v47
    %v132 = vunpack.c.h.b16 %v47
    %v133 = vunpack.c.l.b16 %v48
    %v134 = vunpack.c.h.b16 %v48
    %v135 = vunpack.c.l.b16 %v49
    %v136 = vunpack.c.h.b16 %v49
    %v137 = vunpack.c.l.b16 %v50
    %v138 = vunpack.c.h.b16 %v50
    %v139 = vpack.c.b16 %v133, %v131
    %v140 = vpack.c.b16 %v134, %v132
    %v141 = vpack.c.b16 %v137, %v135
    %v142 = vpack.c.b16 %v138, %v136
    %vm145 = vcmask 244736
    %v147 = vsel %vm145, %v44, 0
    %vm149 = vcmask 1046528
    %v151 = vsel %vm149, %v141, 0
    %v154 = vsel %vm149, %v142, 0
    %156 = vmatprep.subr.bf16.mxu0 %v140
    %157 = vmatpush1.bf16.msra.mxu0 %v139
    %158 = vmatprep.subr.bf16.mxu0 %v154
    %159 = vmatpush1.bf16.msra.mxu0 %v151
    %160 = vmatprep.subr.bf16.mxu0 0
    %161 = vmatpush1.bf16.msra.mxu0 0
    %162 = vmatprep.subr.bf16.mxu0 0
    %163 = vmatpush1.bf16.msra.mxu0 0
    %164 = vmatprep.subr.bf16.mxu0 0
    %165 = vmatpush1.bf16.msra.mxu0 0
    %166 = vmatprep.subr.bf16.mxu0 0
    %167 = vmatpush1.bf16.msra.mxu0 0
    %168 = vmatprep.subr.bf16.mxu0 0
    %169 = vmatpush1.bf16.msra.mxu0 0
    %170 = vmatprep.subr.bf16.mxu0 0
    %171 = vmatpush1.bf16.msra.mxu0 0
    %172 = vmatprep.subr.bf16.mxu0 0
    %173 = vmatpush1.bf16.msra.mxu0 0
    %174 = vmatprep.subr.bf16.mxu0 0
    %175 = vmatpush1.bf16.msra.mxu0 0
    %176 = vmatprep.subr.bf16.mxu0 0
    %177 = vmatpush1.bf16.msra.mxu0 0
    %178 = vmatprep.subr.bf16.mxu0 0
    %179 = vmatpush1.bf16.msra.mxu0 0
    %180 = vmatprep.subr.bf16.mxu0 0
    %181 = vmatpush1.bf16.msra.mxu0 0
    %182 = vmatprep.subr.bf16.mxu0 0
    %183 = vmatpush1.bf16.msra.mxu0 0
    %184 = vmatprep.subr.bf16.mxu0 0
    %185 = vmatpush1.bf16.msra.mxu0 0
    %186 = vmatprep.subr.bf16.mxu0 0
    %187 = vmatpush1.bf16.msra.mxu0 0
    %188 = vmatprep.mubr.bf16.mxu0 0
    %189 = vmatmul.mubr.bf16.gmra.mrb[0].mxu0 %v147
    %v190 = vpop.f32.mrb[0].mxu0
    %v191 = vadd.f32 %v121, %v190
    %v192 = vpop.f32.mrb[0].mxu0
    %v193 = vadd.f32 %v123, %v192
    %v194 = vpop.f32.mrb[0].mxu0
    %v195 = vpop.f32.mrb[0].mxu0
    %196 = vdwg.mxu0
    %v197 = vld [vmem:[%s4] sm:$0x3]
    %v199 = vlaneseq
    %v200 = vshrl.u32 %v199, 7
    %v201 = vsub.s32 0, %v200
    %v202 = vrot.slane %v197, %v201
    %v203 = vlaneseq
    %v204 = vshrl.u32 %v203, 7
    %v205 = vsub.s32 1, %v204
    %v206 = vrot.slane %v197, %v205
    %v209 = vadd.f32 %v191, %v202
    %v210 = vadd.f32 %v193, %v206
    %v211 = vmax.f32 %v209, 0.0
    %v212 = vmax.f32 %v210, 0.0
    %v213 = vld [vmem:[%s5] sm:$0x3]
    %v215 = vlaneseq
    %v216 = vshrl.u32 %v215, 7
    %v217 = vsub.s32 0, %v216
    %v218 = vrot.slane %v213, %v217
    %v219 = vlaneseq
    %v220 = vshrl.u32 %v219, 7
    %v221 = vsub.s32 1, %v220
    %v222 = vrot.slane %v213, %v221
    %v225 = vmul.f32 %v211, %v218
    %v226 = vmul.f32 %v212, %v222
    %vm227 = vcmask 1041408
    %v228 = vsel %vm227, %v225, 0.0
    %v229 = vsel %vm227, %v226, 0.0
    %v230 = vadd.f32 %v228, %v229
    %231 = vadd.xlane.f32.xlu0 %v230
    %v232 = vpop.xlane.xlu0 %231
    %v233 = vld [vmem:[#allocation2] sm:$0x1]
    %v235 = vlaneseq
    %v236 = vshrl.u32 %v235, 7
    %v237 = vsub.s32 0, %v236
    %v238 = vrot.slane %v233, %v237
    %v240 = vadd.f32 %v232, %v238
    %vm241 = vcmask 1024
    %242 = vst.msk [vmem:[%s7] sm:$0x3] %vm241, %v240
    // Predicated region
    $region34: #{critic_forward.1} parent=1 // pred_check
      _
    $region35: #{critic_forward.1} parent=1 // pred_check_branch
      %244 = sbr.rel (0) target = $region37
    $region36: #{critic_forward.1} parent=1 // pred_region
      _
    $region37: #{critic_forward.1} parent=1 // pred_fallthru
      _
    // Predicated region
    $region38: #{critic_forward.1} parent=1 // pred_check
      _
    $region39: #{critic_forward.1} parent=1 // pred_check_branch
      %246 = sbr.rel (0) target = $region41
    $region40: #{critic_forward.1} parent=1 // pred_region
      _
    $region41: #{critic_forward.1} parent=1 // pred_fallthru
      _
    %247 = vsyncpa [#allocation4], 1

</llo_original>
